<compile_context>
chip_gen: v7x
topology: tpu7x:2x2x1
jax: 0.10.0
libtpu: 0.0.40
codegen_flags: <defaults>
</compile_context>

<pallas_src>
import functools
import math

import numpy as np
import jax
import jax.numpy as jnp
from jax import lax
from jax.experimental import pallas as pl
from jax.experimental.pallas import tpu as pltpu


def _round_up(x, m):
    return ((x + m - 1) // m) * m


def _cdiv(a, b):
    return -(-a // b)


# MXU operand dtype: bf16 feed + f32 accumulation (preferred_element_type) is the native
# MXU rate on v5e/v6e/v7x and halves input DMA bytes.  Softmax / logits math stays f32.
MXU_DTYPE = jnp.bfloat16


# ----------------------------- Pallas kernel --------------------------------
def _gnn_batched_kernel(nvalid_ref, x_ref, w_ref, a_ref, ab_ref, o_ref, s_ref, *,
                        num_head, dh, gb, n_max):
    """One grid step == a block of `gb` graphs, each padded to n_max nodes.

    nvalid_ref : SMEM [G_pad]              valid node count per graph (scalar prefetch)
    x_ref      : [gb*n_max, F]   (bf16)    gathered node features, graphs stacked on rows
    w_ref      : [F, H_pad]      (bf16)    rel_weight^T, zero-padded to 128 lanes, resident
    a_ref      : [H_pad, A]      (bf16)    packed attention block matrix, resident:
                                           col 2h   = aw_self[h]  in rows h*dh:(h+1)*dh
                                           col 2h+1 = aw_neigh[h] in rows h*dh:(h+1)*dh
    ab_ref     : SMEM [num_head] (f32)     per-head attention bias
    o_ref      : [gb*n_max, H_pad] (f32)   basic + multi-head graph attention (lane dense)
    s_ref      : VMEM [gb*n_max, A] (f32)  scratch for the fused attention scores
    """
    step = pl.program_id(0)
    h_pad = w_ref.shape[-1]

    # (1) basic = X @ W_rel^T fused over all gb graphs: ONE MXU op with M = gb*n_max.
    basic_all = jnp.dot(x_ref[...], w_ref[...], preferred_element_type=jnp.float32)

    # (2) every head's self/neighbor scores for every node of every graph: ONE MXU op.
    s_ref[...] = jnp.dot(basic_all.astype(a_ref.dtype), a_ref[...],
                         preferred_element_type=jnp.float32)

    # Stage `basic` in the output ref; the per-graph loop reads it back and adds attention.
    o_ref[...] = basic_all

    lane_ids = lax.broadcasted_iota(jnp.int32, (n_max, h_pad), 1)
    col_ids = lax.broadcasted_iota(jnp.int32, (n_max, n_max), 1)

    def graph_body(gi, carry):
        n = nvalid_ref[step * gb + gi]                 # valid node count of this graph
        row0 = pl.multiple_of(gi * n_max, 8)
        basic_g = o_ref[pl.ds(row0, n_max), :]         # [n_max, h_pad] f32
        s_g = s_ref[pl.ds(row0, n_max), :]             # [n_max, a_cols] f32
        s_gT = s_g.T                                   # hoisted out of the head loop
        col_valid = col_ids < n                        # mask padded neighbor columns

        hidden = jnp.zeros((n_max, h_pad), jnp.float32)
        # TODO(synk): for very large graphs / many heads, move to lax.fori_loop over heads
        # plus flash-style tiling of the neighbor axis (bounds the [n,n] temporaries for
        # v7x), and pack heads block-diagonally to cut the masked-lane aggregation's
        # num_head*2*n^2*H_pad MXU flops down to the needed 2*n^2*out_dim.
        for h in range(num_head):
            s_self = s_g[:, 2 * h:2 * h + 1]           # [n_max, 1]
            s_neighT = s_gT[2 * h + 1:2 * h + 2, :]    # [1, n_max]
            bias = ab_ref[h]                           # SMEM scalar
            # logits[i, j] = tf_i . aw_self + tf_j . aw_neigh + b
            logits = s_self + s_neighT + bias
            logits = jnp.where(logits > 0, logits, 0.01 * logits)   # F.leaky_relu(0.01)
            logits = jnp.where(col_valid, logits, -1e30)            # drop padded neighbors
            # softmax over neighbors (F.softmax implicit dim=-1 for 2-D input)
            m = jnp.max(logits, axis=-1, keepdims=True)
            e = jnp.exp(logits - m)
            denom = jnp.sum(e, axis=-1, keepdims=True)
            scores = e * pl.reciprocal(denom, approx=True)          # EUP divide
            # head-h features kept at full lane width so each head's output lands directly
            # in its output lanes (no concatenate, no partial stores).
            head_mask = (lane_ids >= h * dh) & (lane_ids < (h + 1) * dh)
            tf_h = jnp.where(head_mask, basic_g, 0.0)
            hidden = hidden + jnp.dot(scores.astype(a_ref.dtype), tf_h.astype(a_ref.dtype),
                                      preferred_element_type=jnp.float32)
        o_ref[pl.ds(row0, n_max), :] = basic_g + hidden
        return carry

    lax.fori_loop(0, gb, graph_body, 0)


def gnn_graph_attention_batched(nvalid, x_flat, w_pad, attn_a, attn_bias, *,
                                num_head, h_dim, n_max, gb):
    """All graphs of one size bucket in ONE pallas_call, gb graphs per grid step.
    Returns a flat lane-dense [G_pad*n_max, H_pad] f32 slab."""
    rows, feat_dim = x_flat.shape
    h_pad = w_pad.shape[1]
    a_cols = attn_a.shape[1]
    dh = h_dim // num_head
    block_rows = gb * n_max
    assert rows % block_rows == 0
    num_steps = rows // block_rows

    kern = functools.partial(_gnn_batched_kernel, num_head=num_head, dh=dh,
                             gb=gb, n_max=n_max)

    flops = int(num_steps * (2 * block_rows * feat_dim * h_pad
                             + 2 * block_rows * h_pad * a_cols
                             + gb * num_head * (2 * n_max * n_max * h_pad
                                                + 8 * n_max * n_max)))
    transcendentals = int(num_steps * gb * num_head * n_max * n_max)
    bytes_accessed = int(x_flat.size * x_flat.dtype.itemsize
                         + w_pad.size * w_pad.dtype.itemsize
                         + attn_a.size * attn_a.dtype.itemsize
                         + 4 * (rows * h_pad + nvalid.size + attn_bias.size))

    # TODO(synk): for production feat dims, pad F to a multiple of 128 (lane-dense x block)
    # and gather rows inside the kernel (pl.Element / manual DMA) instead of jnp.take.
    grid_spec = pltpu.PrefetchScalarGridSpec(
        num_scalar_prefetch=1,                                            # nvalid -> SMEM
        grid=(num_steps,),
        in_specs=[
            pl.BlockSpec((block_rows, feat_dim), lambda s, nv: (s, 0)),   # gb graphs / step
            pl.BlockSpec((feat_dim, h_pad), lambda s, nv: (0, 0)),        # resident weight
            pl.BlockSpec((h_pad, a_cols), lambda s, nv: (0, 0)),          # resident attn A
            pl.BlockSpec(memory_space=pltpu.MemorySpace.SMEM),            # per-head bias
        ],
        out_specs=pl.BlockSpec((block_rows, h_pad), lambda s, nv: (s, 0)),
        scratch_shapes=[pltpu.VMEM((block_rows, a_cols), jnp.float32)],
    )
    return pl.pallas_call(
        kern,
        out_shape=jax.ShapeDtypeStruct((rows, h_pad), jnp.float32),
        grid_spec=grid_spec,
        compiler_params=pltpu.CompilerParams(
            dimension_semantics=("parallel",),     # shards graph blocks over v7x's 2 TCs
            vmem_limit_bytes=48 * 1024 * 1024),
        cost_estimate=pl.CostEstimate(flops=flops, transcendentals=transcendentals,
                                      bytes_accessed=bytes_accessed),
    )(nvalid, x_flat, w_pad, attn_a, attn_bias)


# ------------------------------- Glue (tree) ---------------------------------
class Tree:
    def __init__(self, index, parent=None):
        self.index = index
        self.parent = parent
        self.children = []

    def add_child(self, index):
        c = Tree(index, parent=self)
        self.children.append(c)
        return c


class GNNPallas:
    """Equivalent of mmdet GNN(in_dim, out_dim, num_head, attn_style='cat')."""

    def __init__(self, in_dim, out_dim, num_head=1, attn_style='cat', key=None):
        # TODO(synk): attn_style='dot' branch (rel_weight ModuleList + nn.Dropout) is not
        # implemented; the module default 'cat' is.
        assert attn_style == 'cat'
        assert out_dim % num_head == 0
        self.in_dim = in_dim
        self.out_dim = out_dim
        self.num_head = num_head
        self.graph_scale = 2
        dh = out_dim // num_head
        self.dh = dh

        k1, k2, k3 = jax.random.split(key, 3)
        # rel_weight: nn.Linear(in_dim, out_dim, bias=False); stored transposed [in_dim, out_dim]
        b1 = 1.0 / math.sqrt(in_dim)
        self.w_rel = jax.random.uniform(k1, (in_dim, out_dim), jnp.float32, -b1, b1)
        # attn_weight: nn.ModuleList([nn.Linear(2*dh, 1)] * num_head) -> params SHARED across heads
        b2 = 1.0 / math.sqrt(2 * dh)
        aw = jax.random.uniform(k2, (2 * dh,), jnp.float32, -b2, b2)
        ab = jax.random.uniform(k3, (1,), jnp.float32, -b2, b2)
        self.aw_self = jnp.tile(aw[None, :dh], (num_head, 1))     # [num_head, dh]
        self.aw_neigh = jnp.tile(aw[None, dh:], (num_head, 1))    # [num_head, dh]
        self.ab = jnp.tile(ab[None, :], (num_head, 1))            # [num_head, 1]

        # --- packed / lane-padded parameters for the kernel (bf16 MXU feed) ---
        h_pad = _round_up(out_dim, 128)
        a_cols = _round_up(2 * num_head, 128)
        self.h_pad = h_pad

        w_np = np.zeros((in_dim, h_pad), np.float32)
        w_np[:, :out_dim] = np.asarray(self.w_rel)
        self.w_pad = jnp.asarray(w_np).astype(MXU_DTYPE)

        a_np = np.zeros((h_pad, a_cols), np.float32)
        for h in range(num_head):
            a_np[h * dh:(h + 1) * dh, 2 * h] = np.asarray(self.aw_self[h])
            a_np[h * dh:(h + 1) * dh, 2 * h + 1] = np.asarray(self.aw_neigh[h])
        self.attn_a = jnp.asarray(a_np).astype(MXU_DTYPE)

        # per-head bias rides in SMEM (1-D f32) instead of a resident [8,128] VMEM block
        self.attn_bias = self.ab[:, 0].astype(jnp.float32)

    def forward(self, forest, features, num_obj):
        # ---- host-side traversal: extract graphs + torch's hidden/order bookkeeping ----
        graphs = []            # list of node-index lists
        hidden_sources = []    # torch `hidden` rows in append order: ('g', gid, j) | ('s', obj)
        order = [0] * num_obj
        st = {'count': 0}

        def collect(tree):
            num_child = len(tree.children)
            if num_child and num_child >= self.graph_scale - 1:
                node_index = [tree.index] + [c.index for c in tree.children]
                gid = len(graphs)
                graphs.append(node_index)
                start = 0 if tree.parent is None else 1
                for j in range(start, len(node_index)):
                    hidden_sources.append(('g', gid, j))
                    order[node_index[j]] = st['count']
                    st['count'] += 1
            elif tree.parent is None:
                hidden_sources.append(('s', tree.index))
                order[tree.index] = st['count']
                st['count'] += 1
            for c in tree.children:
                collect(c)

        for t in forest:
            collect(t)

        has_single = any(src[0] == 's' for src in hidden_sources)

        if not graphs:
            # forest of childless roots: hidden is just raw feature rows (torch behaviour)
            rows = np.array([hidden_sources[order[i]][1] for i in range(num_obj)], np.int32)
            return jnp.take(features, jnp.asarray(rows), axis=0)

        h_pad = self.h_pad
        feats_mxu = features.astype(MXU_DTYPE)

        # ---- bucket graphs by padded node count (multiple of 16: bf16 sublane packing) ----
        buckets = {}
        for gid, g_nodes in enumerate(graphs):
            nb = _round_up(len(g_nodes), 16)
            buckets.setdefault(nb, []).append(gid)

        slabs = []          # per-bucket flat [rows_b, h_pad] f32 output slabs
        graph_row0 = {}     # gid -> flat row of that graph's node 0 in the concatenated src
        base = 0
        for nb in sorted(buckets):
            gids = buckets[nb]
            gcount = len(gids)
            # >=256 MXU rows per step, but keep >=2 grid steps for v7x's 2 TensorCores
            gb = max(1, min(_cdiv(256, nb), _cdiv(gcount, 2)))
            g_pad = _round_up(gcount, gb)
            idx_np = np.zeros((g_pad, nb), np.int32)
            nvalid_np = np.ones((g_pad,), np.int32)
            for lg, gid in enumerate(gids):
                g_nodes = graphs[gid]
                idx_np[lg, :len(g_nodes)] = g_nodes
                nvalid_np[lg] = len(g_nodes)
                graph_row0[gid] = base + lg * nb
            # ONE XLA gather feeding the flat bf16 [g_pad*nb, F] slab for this bucket
            x_flat = jnp.take(feats_mxu, jnp.asarray(idx_np.reshape(-1)), axis=0)
            out_b = gnn_graph_attention_batched(
                jnp.asarray(nvalid_np), x_flat, self.w_pad, self.attn_a, self.attn_bias,
                num_head=self.num_head, h_dim=self.out_dim, n_max=nb, gb=gb)
            slabs.append(out_b)
            base += g_pad * nb

        single_base = base
        if has_single:
            # childless roots contribute raw feature rows; torch concatenates them with the
            # out_dim-wide graph rows, which requires in_dim == out_dim
            assert self.in_dim == self.out_dim
            slabs.append(jnp.pad(features.astype(jnp.float32),
                                 ((0, 0), (0, h_pad - self.in_dim))))

        # ---- epilogue: ONE flat gather replaces per-segment slice + concat + reorder ----
        rows = np.zeros((num_obj,), np.int32)
        for i in range(num_obj):
            src = hidden_sources[order[i]]
            if src[0] == 'g':
                rows[i] = graph_row0[src[1]] + src[2]
            else:
                rows[i] = single_base + src[1]

        src_slab = slabs[0] if len(slabs) == 1 else jnp.concatenate(slabs, axis=0)
        return jnp.take(src_slab, jnp.asarray(rows), axis=0)[:, :self.out_dim]


# ------------------------------ reference (JAX) -------------------------------
def _ref_graph_attention(x, w_rel, aw_self, aw_neigh, ab, num_head):
    basic = x @ w_rel
    dh = w_rel.shape[1] // num_head
    outs = []
    for h in range(num_head):
        tf = basic[:, h * dh:(h + 1) * dh]
        logits = (tf @ aw_self[h])[:, None] + (tf @ aw_neigh[h])[None, :] + ab[h, 0]
        logits = jnp.where(logits > 0, logits, 0.01 * logits)
        scores = jax.nn.softmax(logits, axis=-1)
        outs.append(scores @ tf)
    return basic + jnp.concatenate(outs, axis=-1)


def _ref_forward(gnn, forest, features, num_obj):
    io = dict(hidden=[], order=[0] * num_obj, order_count=0)

    def rec(tree):
        num_child = len(tree.children)
        if num_child and num_child >= gnn.graph_scale - 1:
            node_index = [tree.index] + [c.index for c in tree.children]
            gf = features[jnp.asarray(node_index, jnp.int32)]
            h = _ref_graph_attention(gf, gnn.w_rel, gnn.aw_self, gnn.aw_neigh,
                                     gnn.ab, gnn.num_head)
            if tree.parent is not None:
                h = h[1:]
            io['hidden'].append(h)
            pool = node_index if tree.parent is None else node_index[1:]
            for i in pool:
                io['order'][i] = io['order_count']
                io['order_count'] += 1
        elif tree.parent is None:
            io['hidden'].append(features[tree.index][None])
            io['order'][tree.index] = io['order_count']
            io['order_count'] += 1
        for c in tree.children:
            rec(c)

    for t in forest:
        rec(t)
    hidden = jnp.concatenate(io['hidden'], axis=0)
    order = jnp.asarray(io['order'], jnp.int32)
    return hidden[order]


# ----------------------------------- main -------------------------------------
if __name__ == "__main__":
    in_dim, out_dim, num_head = 16, 32, 2
    num_obj = 8

    key = jax.random.PRNGKey(0)
    kf, kp = jax.random.split(key)
    features = jax.random.normal(kf, (num_obj, in_dim), dtype=jnp.float32)

    # deterministic forest: tree0: 0 -> {1 -> {4, 5}, 2, 3};  tree1: 6 -> {7}
    root0 = Tree(0)
    n1 = root0.add_child(1)
    root0.add_child(2)
    root0.add_child(3)
    n1.add_child(4)
    n1.add_child(5)
    root1 = Tree(6)
    root1.add_child(7)
    forest = [root0, root1]

    gnn = GNNPallas(in_dim, out_dim, num_head=num_head, attn_style='cat', key=kp)

    out = gnn.forward(forest, features, num_obj)
    out = jax.block_until_ready(out)
    assert out.shape == (num_obj, out_dim)

    # check the graph-blocked, padded/masked, bf16-fed kernel against a pure-f32 reference
    ref = _ref_forward(gnn, forest, features, num_obj)
    ref = jax.block_until_ready(ref)
    # tolerance covers bf16 MXU operand rounding + pl.reciprocal(approx=True) in the softmax
    assert jnp.allclose(out, ref, atol=2e-2, rtol=2e-2), \
        f"max abs err {float(jnp.max(jnp.abs(out - ref)))}"

    print("KERNEL_OK")
</pallas_src>

<mosaic_0001>
module attributes {stable_mosaic.version = 11 : i64} {
  func.func @_gnn_batched_kernel(%arg0: i32, %arg1: memref<4xi32, #tpu.memory_space<smem>>, %arg2: memref<32x16xbf16, #tpu.memory_space<vmem>>, %arg3: memref<16x128xbf16, #tpu.memory_space<vmem>>, %arg4: memref<128x128xbf16, #tpu.memory_space<vmem>>, %arg5: memref<2xf32, #tpu.memory_space<smem>>, %arg6: memref<32x128xf32, #tpu.memory_space<vmem>>, %arg7: memref<32x128xf32, #tpu.memory_space<vmem>>) attributes {dimension_semantics = [#tpu.dimension_semantics<parallel>], iteration_bounds = array<i64: 2>, scalar_prefetch = 1 : i64, scratch_operands = 1 : i64, tpu.core_type = #tpu.core_type<tc>, window_params = [{transform_indices = @transform_0, window_bounds = array<i64: 32, 16>}, {pipeline_mode = #tpu.pipeline_mode<synchronous>, transform_indices = @transform_1, window_bounds = array<i64: 16, 128>}, {pipeline_mode = #tpu.pipeline_mode<synchronous>, transform_indices = @transform_2, window_bounds = array<i64: 128, 128>}, {transform_indices = @transform_3, window_bounds = array<i64: 2>}, {transform_indices = @transform_4, window_bounds = array<i64: 32, 128>}]} {
    %c0 = arith.constant 0 : index
    %c0_0 = arith.constant 0 : index
    %0 = vector.load %arg2[%c0, %c0_0] : memref<32x16xbf16, #tpu.memory_space<vmem>>, vector<32x16xbf16>
    %c0_1 = arith.constant 0 : index
    %c0_2 = arith.constant 0 : index
    %1 = vector.load %arg3[%c0_1, %c0_2] : memref<16x128xbf16, #tpu.memory_space<vmem>>, vector<16x128xbf16>
    %cst = arith.constant dense<0.000000e+00> : vector<32x128xf32>
    %2 = tpu.matmul %0, %1, %cst {dimension_numbers = #tpu.dot_dimension_numbers<[1], [0], [0], [1], [0, 0, 1, 1], [], []>} : vector<32x16xbf16>, vector<16x128xbf16>, vector<32x128xf32> -> vector<32x128xf32>
    %3 = arith.truncf %2 : vector<32x128xf32> to vector<32x128xbf16>
    %c0_3 = arith.constant 0 : index
    %c0_4 = arith.constant 0 : index
    %4 = vector.load %arg4[%c0_3, %c0_4] : memref<128x128xbf16, #tpu.memory_space<vmem>>, vector<128x128xbf16>
    %cst_5 = arith.constant dense<0.000000e+00> : vector<32x128xf32>
    %5 = tpu.matmul %3, %4, %cst_5 {dimension_numbers = #tpu.dot_dimension_numbers<[1], [0], [0], [1], [0, 0, 1, 1], [], []>} : vector<32x128xbf16>, vector<128x128xbf16>, vector<32x128xf32> -> vector<32x128xf32>
    %c0_6 = arith.constant 0 : index
    %c0_7 = arith.constant 0 : index
    %6 = vector.load %arg7[%c0_6, %c0_7] : memref<32x128xf32, #tpu.memory_space<vmem>>, vector<32x128xf32>
    tpu.vector_store %arg7[%c0_6, %c0_7], %5 {strides = array<i32>} : memref<32x128xf32, #tpu.memory_space<vmem>>, vector<32x128xf32>,
    %c0_8 = arith.constant 0 : index
    %c0_9 = arith.constant 0 : index
    %7 = vector.load %arg6[%c0_8, %c0_9] : memref<32x128xf32, #tpu.memory_space<vmem>>, vector<32x128xf32>
    tpu.vector_store %arg6[%c0_8, %c0_9], %2 {strides = array<i32>} : memref<32x128xf32, #tpu.memory_space<vmem>>, vector<32x128xf32>,
    %8 = tpu.iota {dimensions = array<i32: 1>} : vector<16x128xi32>
    %9 = tpu.iota {dimensions = array<i32: 1>} : vector<16x16xi32>
    %c0_i32 = arith.constant 0 : i32
    %c2_i32 = arith.constant 2 : i32
    %10 = arith.addi %c0_i32, %c2_i32 : i32
    %c1_i32 = arith.constant 1 : i32
    scf.for %arg8 = %c0_i32 to %10 step %c1_i32  : i32 {
      %c2_i32_11 = arith.constant 2 : i32
      %11 = arith.muli %arg0, %c2_i32_11 : i32
      %12 = arith.addi %11, %arg8 : i32
      %13 = arith.index_cast %12 : i32 to index
      %14 = memref.load %arg1[%13] : memref<4xi32, #tpu.memory_space<smem>>
      %c16_i32 = arith.constant 16 : i32
      %15 = arith.muli %arg8, %c16_i32 : i32
      %16 = tpu.assume_multiple %15, 8 : i32
      %17 = arith.index_cast %16 : i32 to index
      %c0_12 = arith.constant 0 : index
      %18 = vector.load %arg6[%17, %c0_12] : memref<32x128xf32, #tpu.memory_space<vmem>>, vector<16x128xf32>
      %19 = arith.index_cast %16 : i32 to index
      %c0_13 = arith.constant 0 : index
      %20 = vector.load %arg7[%19, %c0_13] : memref<32x128xf32, #tpu.memory_space<vmem>>, vector<16x128xf32>
      %21 = tpu.transpose %20, [1, 0] : vector<16x128xf32> -> vector<128x16xf32>
      %22 = vector.broadcast %14 : i32 to vector<16x16xi32>
      %23 = arith.cmpi slt, %9, %22 : vector<16x16xi32>
      %cst_14 = arith.constant 0.000000e+00 : f32
      %24 = vector.broadcast %cst_14 : f32 to vector<16x128xf32>
      %25 = vector.extract_strided_slice %20 {offsets = [0, 0], sizes = [16, 1], strides = [1, 1]} : vector<16x128xf32> to vector<16x1xf32>
      %26 = vector.extract_strided_slice %21 {offsets = [1, 0], sizes = [1, 16], strides = [1, 1]} : vector<128x16xf32> to vector<1x16xf32>
      %c0_15 = arith.constant 0 : index
      %27 = memref.load %arg5[%c0_15] : memref<2xf32, #tpu.memory_space<smem>>
      %28 = vector.broadcast %25 : vector<16x1xf32> to vector<16x16xf32>
      %29 = vector.broadcast %26 : vector<1x16xf32> to vector<16x16xf32>
      %30 = arith.addf %28, %29 : vector<16x16xf32>
      %31 = vector.broadcast %27 : f32 to vector<16x16xf32>
      %32 = arith.addf %30, %31 : vector<16x16xf32>
      %cst_16 = arith.constant 0.000000e+00 : f32
      %33 = vector.broadcast %cst_16 : f32 to vector<16x16xf32>
      %34 = arith.cmpf ogt, %32, %33 : vector<16x16xf32>
      %cst_17 = arith.constant 0.00999999977 : f32
      %35 = vector.broadcast %cst_17 : f32 to vector<16x16xf32>
      %36 = arith.mulf %35, %32 : vector<16x16xf32>
      %37 = arith.select %34, %32, %36 : vector<16x16xi1>, vector<16x16xf32>
      %cst_18 = arith.constant -1.000000e+30 : f32
      %38 = vector.broadcast %cst_18 : f32 to vector<16x16xf32>
      %39 = arith.select %23, %37, %38 : vector<16x16xi1>, vector<16x16xf32>
      %cst_19 = arith.constant dense<0xFF800000> : vector<16xf32>
      %40 = vector.multi_reduction <maximumf>, %39, %cst_19 [1] : vector<16x16xf32> to vector<16xf32>
      %41 = vector.shape_cast %40 : vector<16xf32> to vector<16x1xf32>
      %42 = vector.broadcast %41 : vector<16x1xf32> to vector<16x16xf32>
      %43 = arith.subf %39, %42 : vector<16x16xf32>
      %44 = math.exp %43 : vector<16x16xf32>
      %cst_20 = arith.constant dense<0.000000e+00> : vector<16xf32>
      %45 = vector.multi_reduction <add>, %44, %cst_20 [1] : vector<16x16xf32> to vector<16xf32>
      %46 = vector.shape_cast %45 : vector<16xf32> to vector<16x1xf32>
      %47 = tpu.reciprocal %46 {approx = true} : vector<16x1xf32> -> vector<16x1xf32>
      %48 = vector.broadcast %47 : vector<16x1xf32> to vector<16x16xf32>
      %49 = arith.mulf %44, %48 : vector<16x16xf32>
      %c0_i32_21 = arith.constant 0 : i32
      %50 = vector.broadcast %c0_i32_21 : i32 to vector<16x128xi32>
      %51 = arith.cmpi sge, %8, %50 : vector<16x128xi32>
      %c16_i32_22 = arith.constant 16 : i32
      %52 = vector.broadcast %c16_i32_22 : i32 to vector<16x128xi32>
      %53 = arith.cmpi slt, %8, %52 : vector<16x128xi32>
      %54 = arith.andi %51, %53 : vector<16x128xi1>
      %cst_23 = arith.constant 0.000000e+00 : f32
      %55 = vector.broadcast %cst_23 : f32 to vector<16x128xf32>
      %56 = arith.select %54, %18, %55 : vector<16x128xi1>, vector<16x128xf32>
      %57 = arith.truncf %49 : vector<16x16xf32> to vector<16x16xbf16>
      %58 = arith.truncf %56 : vector<16x128xf32> to vector<16x128xbf16>
      %cst_24 = arith.constant dense<0.000000e+00> : vector<16x128xf32>
      %59 = tpu.matmul %57, %58, %cst_24 {dimension_numbers = #tpu.dot_dimension_numbers<[1], [0], [0], [1], [0, 0, 1, 1], [], []>} : vector<16x16xbf16>, vector<16x128xbf16>, vector<16x128xf32> -> vector<16x128xf32>
      %60 = arith.addf %24, %59 : vector<16x128xf32>
      %61 = vector.extract_strided_slice %20 {offsets = [0, 2], sizes = [16, 1], strides = [1, 1]} : vector<16x128xf32> to vector<16x1xf32>
      %62 = vector.extract_strided_slice %21 {offsets = [3, 0], sizes = [1, 16], strides = [1, 1]} : vector<128x16xf32> to vector<1x16xf32>
      %c1 = arith.constant 1 : index
      %63 = memref.load %arg5[%c1] : memref<2xf32, #tpu.memory_space<smem>>
      %64 = vector.broadcast %61 : vector<16x1xf32> to vector<16x16xf32>
      %65 = vector.broadcast %62 : vector<1x16xf32> to vector<16x16xf32>
      %66 = arith.addf %64, %65 : vector<16x16xf32>
      %67 = vector.broadcast %63 : f32 to vector<16x16xf32>
      %68 = arith.addf %66, %67 : vector<16x16xf32>
      %cst_25 = arith.constant 0.000000e+00 : f32
      %69 = vector.broadcast %cst_25 : f32 to vector<16x16xf32>
      %70 = arith.cmpf ogt, %68, %69 : vector<16x16xf32>
      %cst_26 = arith.constant 0.00999999977 : f32
      %71 = vector.broadcast %cst_26 : f32 to vector<16x16xf32>
      %72 = arith.mulf %71, %68 : vector<16x16xf32>
      %73 = arith.select %70, %68, %72 : vector<16x16xi1>, vector<16x16xf32>
      %cst_27 = arith.constant -1.000000e+30 : f32
      %74 = vector.broadcast %cst_27 : f32 to vector<16x16xf32>
      %75 = arith.select %23, %73, %74 : vector<16x16xi1>, vector<16x16xf32>
      %cst_28 = arith.constant dense<0xFF800000> : vector<16xf32>
      %76 = vector.multi_reduction <maximumf>, %75, %cst_28 [1] : vector<16x16xf32> to vector<16xf32>
      %77 = vector.shape_cast %76 : vector<16xf32> to vector<16x1xf32>
      %78 = vector.broadcast %77 : vector<16x1xf32> to vector<16x16xf32>
      %79 = arith.subf %75, %78 : vector<16x16xf32>
      %80 = math.exp %79 : vector<16x16xf32>
      %cst_29 = arith.constant dense<0.000000e+00> : vector<16xf32>
      %81 = vector.multi_reduction <add>, %80, %cst_29 [1] : vector<16x16xf32> to vector<16xf32>
      %82 = vector.shape_cast %81 : vector<16xf32> to vector<16x1xf32>
      %83 = tpu.reciprocal %82 {approx = true} : vector<16x1xf32> -> vector<16x1xf32>
      %84 = vector.broadcast %83 : vector<16x1xf32> to vector<16x16xf32>
      %85 = arith.mulf %80, %84 : vector<16x16xf32>
      %c16_i32_30 = arith.constant 16 : i32
      %86 = vector.broadcast %c16_i32_30 : i32 to vector<16x128xi32>
      %87 = arith.cmpi sge, %8, %86 : vector<16x128xi32>
      %c32_i32 = arith.constant 32 : i32
      %88 = vector.broadcast %c32_i32 : i32 to vector<16x128xi32>
      %89 = arith.cmpi slt, %8, %88 : vector<16x128xi32>
      %90 = arith.andi %87, %89 : vector<16x128xi1>
      %cst_31 = arith.constant 0.000000e+00 : f32
      %91 = vector.broadcast %cst_31 : f32 to vector<16x128xf32>
      %92 = arith.select %90, %18, %91 : vector<16x128xi1>, vector<16x128xf32>
      %93 = arith.truncf %85 : vector<16x16xf32> to vector<16x16xbf16>
      %94 = arith.truncf %92 : vector<16x128xf32> to vector<16x128xbf16>
      %cst_32 = arith.constant dense<0.000000e+00> : vector<16x128xf32>
      %95 = tpu.matmul %93, %94, %cst_32 {dimension_numbers = #tpu.dot_dimension_numbers<[1], [0], [0], [1], [0, 0, 1, 1], [], []>} : vector<16x16xbf16>, vector<16x128xbf16>, vector<16x128xf32> -> vector<16x128xf32>
      %96 = arith.addf %60, %95 : vector<16x128xf32>
      %97 = arith.addf %18, %96 : vector<16x128xf32>
      %98 = arith.index_cast %16 : i32 to index
      %c0_33 = arith.constant 0 : index
      %99 = vector.load %arg6[%98, %c0_33] : memref<32x128xf32, #tpu.memory_space<vmem>>, vector<16x128xf32>
      tpu.vector_store %arg6[%98, %c0_33], %97 {strides = array<i32>} : memref<32x128xf32, #tpu.memory_space<vmem>>, vector<16x128xf32>,
    }
    %c2_i32_10 = arith.constant 2 : i32
    return
  }
  func.func @transform_0(%arg0: i32, %arg1: memref<4xi32, #tpu.memory_space<smem>>) -> (i32, i32) {
    %c0_i32 = arith.constant 0 : i32
    %c0_i32_0 = arith.constant 0 : i32
    return %arg0, %c0_i32 : i32, i32
  }
  func.func @transform_1(%arg0: i32, %arg1: memref<4xi32, #tpu.memory_space<smem>>) -> (i32, i32) {
    %c0_i32 = arith.constant 0 : i32
    %c0_i32_0 = arith.constant 0 : i32
    %c0_i32_1 = arith.constant 0 : i32
    return %c0_i32, %c0_i32_0 : i32, i32
  }
  func.func @transform_2(%arg0: i32, %arg1: memref<4xi32, #tpu.memory_space<smem>>) -> (i32, i32) {
    %c0_i32 = arith.constant 0 : i32
    %c0_i32_0 = arith.constant 0 : i32
    %c0_i32_1 = arith.constant 0 : i32
    return %c0_i32, %c0_i32_0 : i32, i32
  }
  func.func @transform_3(%arg0: i32, %arg1: memref<4xi32, #tpu.memory_space<smem>>) -> i32 {
    %c0_i32 = arith.constant 0 : i32
    %c0_i32_0 = arith.constant 0 : i32
    return %c0_i32 : i32
  }
  func.func @transform_4(%arg0: i32, %arg1: memref<4xi32, #tpu.memory_space<smem>>) -> (i32, i32) {
    %c0_i32 = arith.constant 0 : i32
    %c0_i32_0 = arith.constant 0 : i32
    return %arg0, %c0_i32 : i32, i32
  }
}

</mosaic_0001>

<llo_original>
// kernel: tpu_custom_call.1
$region0: #{tpu_custom_call.1}
  #allocation0 [shape = 'u32[]', space=smem, size = 0x4, offset = 0x4, fixed_abs, tag = 'smem constant byte address 0x4 - core index']
  #allocation1 [shape = 'u32[144,128]{1,0:T(1,128)}', space=vmem, size = 0x12000, scoped, tag = 'internal scratch']
  #allocation2 [shape = 'f32[32,128]{1,0:T(8,128)}', space=vmem, size = 0x4000, scoped, tag = 'scratch operand']
  #allocation3 [shape = 's32[1]{0}', space=sflag, size = 0x4, scoped, tag = 'scoped memory for tpu_custom_call.1']
  #allocation4 [shape = 'u8[512]{0}', space=smem, size = 0x200, scoped, tag = 'prefetched SMEM operand 0']
  %s0 = inlined_call_operand.vmem [shape: s32[4], index: 0, kind: input, shape index: {}]
  %s1 = inlined_call_operand.vmem [shape: bf16[64,16], index: 1, kind: input, shape index: {}]
  %s2 = inlined_call_operand.vmem [shape: bf16[16,128], index: 2, kind: input, shape index: {}]
  %s3 = inlined_call_operand.hbm [shape: bf16[128,128], index: 3, kind: input, shape index: {}]
  %s4 = inlined_call_operand.vmem [shape: f32[2], index: 4, kind: input, shape index: {}]
  %s5 = inlined_call_operand.hbm [shape: f32[64,128], index: 5, kind: output, shape index: {}]
  %s6 = sld [smem:[#allocation0]]
  $region64: #{tpu_custom_call.1} parent=0
    _
  %s8 = ssub.s32 1, %s6
  %s9 = scalar_select 0, %s8, %s6
  %s10 = sshll.u32 %s0, 4
  %s11 = int_to_ptr.vmem [resolvable:$true] %s10
  %13 = dma.vmem_to_smem %s11, 16, [#allocation4], [#allocation3]
  %14 = dma.done [#allocation3], 16
  %15 = sfence
  $region1: #{tpu_custom_call.1} parent=0
    #allocation5 [shape = 'u8[32768]{0}', space=vmem, size = 0x8000, scoped, tag = 'input window, operand 3, single buffered']
    #allocation6 [shape = 's32[2]{0}', space=sflag, size = 0x8, scoped, tag = 'scoped memory for tpu_custom_call.1']
    #allocation7 [shape = 's32[2]{0}', space=sflag, size = 0x8, scoped, tag = 'scoped memory for tpu_custom_call.1']
    #allocation8 [shape = 's32[2]{0}', space=sflag, size = 0x8, scoped, tag = 'scoped memory for tpu_custom_call.1']
    #allocation9 [shape = 'u8[512]{0}', space=smem, size = 0x200, scoped, tag = 'input window, operand 4, single buffered']
    #allocation10 [shape = 'u8[32768]{0}', space=vmem, size = 0x8000, scoped, tag = 'output window, operand 0']
    %16 = vsyncpa [#allocation6], 0
    %17 = vsyncpa [#allocation8], 0
    %18 = vsyncpa [#allocation7], 0
    %s19 = scalar_lea.sflag [#allocation7], 1
    %20 = vsyncpa %s19, 0
    loop: start=0, step=1, limit=4
    $region2: #{tpu_custom_call.1} parent=1 // loop_pre_header
      _
    $region3: #{tpu_custom_call.1} parent=1 // loop_header
      %s22 = sphi 0, %s26
      %p23 = scmp.ge.s32.totalorder %s22, 4
      %s32 = sphi 0, %s34
      %s35 = sphi 0, %s32
      %s36 = sphi 0, %s35
      %s52 = sphi 0, %s36
      %s56 = sphi 0, %s56
      %s58 = sphi 0, %s56
      %s59 = sphi 0, %s58
      %s73 = sphi 0, %s59
      %s77 = sphi 0, %s77
      %s79 = sphi 0, %s77
      %s80 = sphi 0, %s79
      %s94 = sphi 0, %s80
      %s98 = sphi 0, %s98
      %s100 = sphi 0, %s98
      %s101 = sphi 0, %s100
      %s115 = sphi 0, %s101
      %s121 = sphi 0, %s123
      %s124 = sphi 0, %s121
      %s125 = sphi 0, %s124
      %s141 = sphi 0, %s125
    $region4: #{tpu_custom_call.1} parent=1 // loop_header_branch
      %25 = sbr.rel (%p23) target = $region8
    $region5: #{tpu_custom_call.1} parent=1 // loop_body
      %s27 = ssub.s32 %s22, 1
      %s28 = ssub.s32 %s22, 2
      %s29 = sadd.s32 %s22, 1
      %s30 = ssub.s32 %s22, %s29
      %p31 = scmp.eq.s32.totalorder %s30, 0
      %s33 = sadd.s32 %s32, 1
      %s34 = scalar_select %p31, %s32, %s33
      %p37 = pneg %p31
      %p38 = scmp.eq.s32.totalorder %s22, 1
      %p39 = por %p37, %p38
      %p40 = scmp.ne.s32.totalorder %s32, %s35
      %p41 = scmp.eq.s32.totalorder %s22, 0
      %p42 = por %p40, %p41
      %p43 = scmp.ne.s32.totalorder %s32, %s35
      %p44 = scmp.eq.s32.totalorder %s27, 1
      %p45 = por %p43, %p44
      %p46 = scmp.ne.s32.totalorder %s35, %s36
      %p47 = scmp.eq.s32.totalorder %s27, 0
      %p48 = por %p46, %p47
      %p49 = scmp.ne.s32.totalorder %s35, %s36
      %p50 = scmp.eq.s32.totalorder %s28, 1
      %p51 = por %p49, %p50
      %p53 = scmp.ne.s32.totalorder %s36, %s52
      %p54 = scmp.eq.s32.totalorder %s28, 0
      %p55 = por %p53, %p54
      %s57 = sadd.s32 %s56, 1
      %p60 = scmp.eq.s32.totalorder %s22, 1
      %p61 = scmp.ne.s32.totalorder %s56, %s58
      %p62 = scmp.eq.s32.totalorder %s22, 0
      %p63 = por %p61, %p62
      %p64 = scmp.ne.s32.totalorder %s56, %s58
      %p65 = scmp.eq.s32.totalorder %s27, 1
      %p66 = por %p64, %p65
      %p67 = scmp.ne.s32.totalorder %s58, %s59
      %p68 = scmp.eq.s32.totalorder %s27, 0
      %p69 = por %p67, %p68
      %p70 = scmp.ne.s32.totalorder %s58, %s59
      %p71 = scmp.eq.s32.totalorder %s28, 1
      %p72 = por %p70, %p71
      %p74 = scmp.ne.s32.totalorder %s59, %s73
      %p75 = scmp.eq.s32.totalorder %s28, 0
      %p76 = por %p74, %p75
      %s78 = sadd.s32 %s77, 1
      %p81 = scmp.eq.s32.totalorder %s22, 1
      %p82 = scmp.ne.s32.totalorder %s77, %s79
      %p83 = scmp.eq.s32.totalorder %s22, 0
      %p84 = por %p82, %p83
      %p85 = scmp.ne.s32.totalorder %s77, %s79
      %p86 = scmp.eq.s32.totalorder %s27, 1
      %p87 = por %p85, %p86
      %p88 = scmp.ne.s32.totalorder %s79, %s80
      %p89 = scmp.eq.s32.totalorder %s27, 0
      %p90 = por %p88, %p89
      %p91 = scmp.ne.s32.totalorder %s79, %s80
      %p92 = scmp.eq.s32.totalorder %s28, 1
      %p93 = por %p91, %p92
      %p95 = scmp.ne.s32.totalorder %s80, %s94
      %p96 = scmp.eq.s32.totalorder %s28, 0
      %p97 = por %p95, %p96
      %s99 = sadd.s32 %s98, 1
      %p102 = scmp.eq.s32.totalorder %s22, 1
      %p103 = scmp.ne.s32.totalorder %s98, %s100
      %p104 = scmp.eq.s32.totalorder %s22, 0
      %p105 = por %p103, %p104
      %p106 = scmp.ne.s32.totalorder %s98, %s100
      %p107 = scmp.eq.s32.totalorder %s27, 1
      %p108 = por %p106, %p107
      %p109 = scmp.ne.s32.totalorder %s100, %s101
      %p110 = scmp.eq.s32.totalorder %s27, 0
      %p111 = por %p109, %p110
      %p112 = scmp.ne.s32.totalorder %s100, %s101
      %p113 = scmp.eq.s32.totalorder %s28, 1
      %p114 = por %p112, %p113
      %p116 = scmp.ne.s32.totalorder %s101, %s115
      %p117 = scmp.eq.s32.totalorder %s28, 0
      %p118 = por %p116, %p117
      %s119 = ssub.s32 %s22, %s29
      %p120 = scmp.eq.s32.totalorder %s119, 0
      %s122 = sadd.s32 %s121, 1
      %s123 = scalar_select %p120, %s121, %s122
      %p126 = pneg %p120
      %p127 = scmp.eq.s32.totalorder %s22, 1
      %p128 = por %p126, %p127
      %p129 = scmp.ne.s32.totalorder %s121, %s124
      %p130 = scmp.eq.s32.totalorder %s22, 0
      %p131 = por %p129, %p130
      %p132 = scmp.ne.s32.totalorder %s121, %s124
      %p133 = scmp.eq.s32.totalorder %s27, 1
      %p134 = por %p132, %p133
      %p135 = scmp.ne.s32.totalorder %s124, %s125
      %p136 = scmp.eq.s32.totalorder %s27, 0
      %p137 = por %p135, %p136
      %p138 = scmp.ne.s32.totalorder %s124, %s125
      %p139 = scmp.eq.s32.totalorder %s28, 1
      %p140 = por %p138, %p139
      %p142 = scmp.ne.s32.totalorder %s125, %s141
      %p143 = scmp.eq.s32.totalorder %s28, 0
      %p144 = por %p142, %p143
      %p145 = scmp.le.s32.totalorder 1, %s22
      %p146 = scmp.lt.s32.totalorder %s22, 3
      %p147 = pnand %p145, %p146
      %p148 = pneg %p147
      // Predicated region
      $region9: #{tpu_custom_call.1} parent=5 // pred_check
        _
      $region10: #{tpu_custom_call.1} parent=5 // pred_check_branch
        %150 = sbr.rel (%p147) target = $region12
      $region11: #{tpu_custom_call.1} parent=5 // pred_region
        %s151 = ssub.s32 %s22, 1
        // Predicated region
        $region13: #{tpu_custom_call.1} parent=11 // pred_check
          %p152 = pneg %p69
        $region14: #{tpu_custom_call.1} parent=11 // pred_check_branch
          %154 = sbr.rel (%p152) target = $region16
        $region15: #{tpu_custom_call.1} parent=11 // pred_region
          _
        $region16: #{tpu_custom_call.1} parent=11 // pred_fallthru
          _
        // Predicated region
        $region17: #{tpu_custom_call.1} parent=11 // pred_check
          %p155 = pneg %p90
        $region18: #{tpu_custom_call.1} parent=11 // pred_check_branch
          %157 = sbr.rel (%p155) target = $region20
        $region19: #{tpu_custom_call.1} parent=11 // pred_region
          %s159 = ssub.s32 1024, 1024
          %160 = vsyncadd [#allocation6], %s159
          %s161 = sshll.u32 [#allocation5], 4
          %s162 = int_to_ptr.vmem [resolvable:$true] %s161
          %167 = dma.hbm_to_vmem [thread:$0]  %s3, 1024, %s162, [#allocation6], 64, 64, 4
        $region20: #{tpu_custom_call.1} parent=11 // pred_fallthru
          _
        // Predicated region
        $region21: #{tpu_custom_call.1} parent=11 // pred_check
          %p168 = pneg %p111
        $region22: #{tpu_custom_call.1} parent=11 // pred_check_branch
          %170 = sbr.rel (%p168) target = $region24
        $region23: #{tpu_custom_call.1} parent=11 // pred_region
          %s172 = ssub.s32 16, 16
          %173 = vsyncadd [#allocation8], %s172
          %s175 = sshll.u32 %s4, 4
          %s176 = int_to_ptr.vmem [resolvable:$true] %s175
          %178 = dma.vmem_to_smem %s176, 16, [#allocation9], [#allocation8]
        $region24: #{tpu_custom_call.1} parent=11 // pred_fallthru
          _
      $region12: #{tpu_custom_call.1} parent=5 // pred_fallthru
        _
      %p179 = scmp.lt.s32.totalorder %s22, 2
      // Predicated region
      $region25: #{tpu_custom_call.1} parent=5 // pred_check
        %p180 = pneg %p179
      $region26: #{tpu_custom_call.1} parent=5 // pred_check_branch
        %182 = sbr.rel (%p180) target = $region28
      $region27: #{tpu_custom_call.1} parent=5 // pred_region
        // Predicated region
        $region29: #{tpu_custom_call.1} parent=27 // pred_check
          %p183 = pneg %p42
        $region30: #{tpu_custom_call.1} parent=27 // pred_check_branch
          %185 = sbr.rel (%p183) target = $region32
        $region31: #{tpu_custom_call.1} parent=27 // pred_region
          %s186 = smul.u32 4, %s22
          %p187 = scmp.lt.s32.totalorder %s186, 7
          %s188 = scalar_select %p187, %s186, 7
          %s189 = smul.addr %s188, 4
          %s190 = scalar_lea.vmem %s1, %s189
          %s191 = smul.u32 4, %s22
        $region32: #{tpu_custom_call.1} parent=27 // pred_fallthru
          _
      $region28: #{tpu_custom_call.1} parent=5 // pred_fallthru
        _
      %p192 = scmp.le.s32.totalorder 1, %s22
      %p193 = scmp.lt.s32.totalorder %s22, 3
      %p194 = pnand %p192, %p193
      %p195 = pneg %p194
      // Predicated region
      $region33: #{tpu_custom_call.1} parent=5 // pred_check
        _
      $region34: #{tpu_custom_call.1} parent=5 // pred_check_branch
        %197 = sbr.rel (%p194) target = $region36
      $region35: #{tpu_custom_call.1} parent=5 // pred_region
        %s198 = ssub.s32 %s22, 1
        // Predicated region
        $region37: #{tpu_custom_call.1} parent=35 // pred_check
          %p199 = pneg %p90
        $region38: #{tpu_custom_call.1} parent=35 // pred_check_branch
          %201 = sbr.rel (%p199) target = $region40
        $region39: #{tpu_custom_call.1} parent=35 // pred_region
          %202 = dma.done [#allocation6], 1024
        $region40: #{tpu_custom_call.1} parent=35 // pred_fallthru
          _
        // Predicated region
        $region41: #{tpu_custom_call.1} parent=35 // pred_check
          %p203 = pneg %p111
        $region42: #{tpu_custom_call.1} parent=35 // pred_check_branch
          %205 = sbr.rel (%p203) target = $region44
        $region43: #{tpu_custom_call.1} parent=35 // pred_region
          %206 = dma.done [#allocation8], 16
        $region44: #{tpu_custom_call.1} parent=35 // pred_fallthru
          _
        %207 = sfence
        %s208 = smul.u32 4, %s27
        %p209 = scmp.lt.s32.totalorder %s208, 7
        %s210 = scalar_select %p209, %s208, 7
        %s211 = smul.addr %s210, 4
        %s212 = scalar_lea.vmem %s1, %s211
        %p213 = pneg %p48
        %p214 = pneg %p45
        %p215 = pneg %p69
        %p216 = pneg %p66
        %p217 = pneg %p90
        %p218 = pneg %p87
        %p219 = pneg %p111
        %p220 = pneg %p108
        %p221 = pneg %p137
        %p222 = pneg %p134
        %s223 = sand.u32 %s124, 1
        %s224 = scalar_lea.sflag [#allocation7], %s223
        %s225 = sand.u32 %s124, 1
        %s226 = smul.addr %s225, 32
        %s227 = scalar_lea.vmem [#allocation10], %s226
        %s228 = smul.u32 4, %s27
        %p229 = scmp.lt.s32.totalorder %s228, 7
        %s230 = scalar_select %p229, %s228, 7
        %s231 = smul.addr %s230, 4
        %s232 = scalar_lea.vmem %s1, %s231
        %s233 = smul.u32 4, %s27
        %s234 = smul.u32 4, %s27
        %v236 = vld [vmem:[%s232] sm:$0xf]
        %v237 = vld [vmem:[%s232 + $0x4] sm:$0xf]
        %v238 = vld [vmem:[%s232 + $0x8] sm:$0xf]
        %v239 = vld [vmem:[%s232 + $0xc] sm:$0xf]
        %v240 = vld [vmem:[%s2] sm:$0xf]
        %v241 = vld [vmem:[%s2 + $0x4] sm:$0xf]
        %v246 = vunpack.c.l.b16 %v236
        %v247 = vunpack.c.l.b16 %v237
        %v248 = vunpack.c.l.b16 %v238
        %v249 = vunpack.c.l.b16 %v239
        %v250 = vpack.c.b16 %v247, %v246
        %v251 = vpack.c.b16 %v249, %v248
        %v254 = vunpack.c.l.b16 %v240
        %v255 = vunpack.c.l.b16 %v241
        %v256 = vpack.c.b16 %v255, %v254
        %vm258 = vcmask 130048
        %v260 = vsel %vm258, %v250, 0
        %v263 = vsel %vm258, %v251, 0
        %265 = vmatprep.subr.bf16.mxu0 0
        %266 = vmatpush1.bf16.msra.mxu0 %v256
        %267 = vmatprep.subr.bf16.mxu0 0
        %268 = vmatpush1.bf16.msra.mxu0 0
        %269 = vmatprep.subr.bf16.mxu0 0
        %270 = vmatpush1.bf16.msra.mxu0 0
        %271 = vmatprep.subr.bf16.mxu0 0
        %272 = vmatpush1.bf16.msra.mxu0 0
        %273 = vmatprep.subr.bf16.mxu0 0
        %274 = vmatpush1.bf16.msra.mxu0 0
        %275 = vmatprep.subr.bf16.mxu0 0
        %276 = vmatpush1.bf16.msra.mxu0 0
        %277 = vmatprep.subr.bf16.mxu0 0
        %278 = vmatpush1.bf16.msra.mxu0 0
        %279 = vmatprep.subr.bf16.mxu0 0
        %280 = vmatpush1.bf16.msra.mxu0 0
        %281 = vmatprep.subr.bf16.mxu0 0
        %282 = vmatpush1.bf16.msra.mxu0 0
        %283 = vmatprep.subr.bf16.mxu0 0
        %284 = vmatpush1.bf16.msra.mxu0 0
        %285 = vmatprep.subr.bf16.mxu0 0
        %286 = vmatpush1.bf16.msra.mxu0 0
        %287 = vmatprep.subr.bf16.mxu0 0
        %288 = vmatpush1.bf16.msra.mxu0 0
        %289 = vmatprep.subr.bf16.mxu0 0
        %290 = vmatpush1.bf16.msra.mxu0 0
        %291 = vmatprep.subr.bf16.mxu0 0
        %292 = vmatpush1.bf16.msra.mxu0 0
        %293 = vmatprep.subr.bf16.mxu0 0
        %294 = vmatpush1.bf16.msra.mxu0 0
        %295 = vmatprep.subr.bf16.mxu0 0
        %296 = vmatpush1.bf16.msra.mxu0 0
        %297 = vmatprep.mubr.bf16.mxu0 0
        %298 = vmatmul.mubr.bf16.gmra.mrb[0].mxu0 %v260
        %v299 = vpop.f32.mrb[0].mxu0
        %v300 = vadd.f32 0.0, %v299
        %v301 = vpop.f32.mrb[0].mxu0
        %v302 = vpop.f32.mrb[0].mxu0
        %v303 = vadd.f32 0.0, %v302
        %v304 = vpop.f32.mrb[0].mxu0
        %305 = vmatprep.mubr.bf16.mxu0 0
        %306 = vmatmul.mubr.bf16.gmra.mrb[0].mxu0 %v263
        %v307 = vpop.f32.mrb[0].mxu0
        %v308 = vadd.f32 0.0, %v307
        %v309 = vpop.f32.mrb[0].mxu0
        %v310 = vpop.f32.mrb[0].mxu0
        %v311 = vadd.f32 0.0, %v310
        %v312 = vpop.f32.mrb[0].mxu0
        %313 = vdwg.mxu0
        %v314 = vpack.c.bf16 %v303, %v300
        %v315 = vpack.c.bf16 %v311, %v308
        %v316 = vld [vmem:[#allocation5] sm:$0xf]
        %v317 = vld [vmem:[#allocation5 + $0x4] sm:$0xf]
        %v318 = vld [vmem:[#allocation5 + $0x8] sm:$0xf]
        %v319 = vld [vmem:[#allocation5 + $0xc] sm:$0xf]
        %v320 = vld [vmem:[#allocation5 + $0x10] sm:$0xf]
        %v321 = vld [vmem:[#allocation5 + $0x14] sm:$0xf]
        %v322 = vld [vmem:[#allocation5 + $0x18] sm:$0xf]
        %v323 = vld [vmem:[#allocation5 + $0x1c] sm:$0xf]
        %v324 = vld [vmem:[#allocation5 + $0x20] sm:$0xf]
        %v325 = vld [vmem:[#allocation5 + $0x24] sm:$0xf]
        %v326 = vld [vmem:[#allocation5 + $0x28] sm:$0xf]
        %v327 = vld [vmem:[#allocation5 + $0x2c] sm:$0xf]
        %v328 = vld [vmem:[#allocation5 + $0x30] sm:$0xf]
        %v329 = vld [vmem:[#allocation5 + $0x34] sm:$0xf]
        %v330 = vld [vmem:[#allocation5 + $0x38] sm:$0xf]
        %v331 = vld [vmem:[#allocation5 + $0x3c] sm:$0xf]
        %v348 = vunpack.c.l.b16 %v316
        %v349 = vunpack.c.l.b16 %v317
        %v350 = vunpack.c.l.b16 %v318
        %v351 = vunpack.c.l.b16 %v319
        %v352 = vunpack.c.l.b16 %v320
        %v353 = vunpack.c.l.b16 %v321
        %v354 = vunpack.c.l.b16 %v322
        %v355 = vunpack.c.l.b16 %v323
        %v356 = vunpack.c.l.b16 %v324
        %v357 = vunpack.c.l.b16 %v325
        %v358 = vunpack.c.l.b16 %v326
        %v359 = vunpack.c.l.b16 %v327
        %v360 = vunpack.c.l.b16 %v328
        %v361 = vunpack.c.l.b16 %v329
        %v362 = vunpack.c.l.b16 %v330
        %v363 = vunpack.c.l.b16 %v331
        %v364 = vpack.c.b16 %v349, %v348
        %v365 = vpack.c.b16 %v351, %v350
        %v366 = vpack.c.b16 %v353, %v352
        %v367 = vpack.c.b16 %v355, %v354
        %v368 = vpack.c.b16 %v357, %v356
        %v369 = vpack.c.b16 %v359, %v358
        %v370 = vpack.c.b16 %v361, %v360
        %v371 = vpack.c.b16 %v363, %v362
        %380 = vmatprep.subr.bf16.mxu0 0
        %381 = vmatpush1.bf16.msra.mxu0 %v364
        %382 = vmatprep.subr.bf16.mxu0 0
        %383 = vmatpush1.bf16.msra.mxu0 %v365
        %384 = vmatprep.subr.bf16.mxu0 0
        %385 = vmatpush1.bf16.msra.mxu0 %v366
        %386 = vmatprep.subr.bf16.mxu0 0
        %387 = vmatpush1.bf16.msra.mxu0 %v367
        %388 = vmatprep.subr.bf16.mxu0 0
        %389 = vmatpush1.bf16.msra.mxu0 %v368
        %390 = vmatprep.subr.bf16.mxu0 0
        %391 = vmatpush1.bf16.msra.mxu0 %v369
        %392 = vmatprep.subr.bf16.mxu0 0
        %393 = vmatpush1.bf16.msra.mxu0 %v370
        %394 = vmatprep.subr.bf16.mxu0 0
        %395 = vmatpush1.bf16.msra.mxu0 %v371
        %396 = vmatprep.subr.bf16.mxu0 0
        %397 = vmatpush1.bf16.msra.mxu0 0
        %398 = vmatprep.subr.bf16.mxu0 0
        %399 = vmatpush1.bf16.msra.mxu0 0
        %400 = vmatprep.subr.bf16.mxu0 0
        %401 = vmatpush1.bf16.msra.mxu0 0
        %402 = vmatprep.subr.bf16.mxu0 0
        %403 = vmatpush1.bf16.msra.mxu0 0
        %404 = vmatprep.subr.bf16.mxu0 0
        %405 = vmatpush1.bf16.msra.mxu0 0
        %406 = vmatprep.subr.bf16.mxu0 0
        %407 = vmatpush1.bf16.msra.mxu0 0
        %408 = vmatprep.subr.bf16.mxu0 0
        %409 = vmatpush1.bf16.msra.mxu0 0
        %410 = vmatprep.subr.bf16.mxu0 0
        %411 = vmatpush1.bf16.msra.mxu0 0
        %412 = vmatprep.mubr.bf16.mxu0 0
        %413 = vmatmul.mubr.bf16.gmra.mrb[0].mxu0 %v314
        %v414 = vpop.f32.mrb[0].mxu0
        %v415 = vadd.f32 0.0, %v414
        %v416 = vpop.f32.mrb[0].mxu0
        %v417 = vpop.f32.mrb[0].mxu0
        %v418 = vadd.f32 0.0, %v417
        %v419 = vpop.f32.mrb[0].mxu0
        %420 = vmatprep.mubr.bf16.mxu0 0
        %421 = vmatmul.mubr.bf16.gmra.mrb[0].mxu0 %v315
        %v422 = vpop.f32.mrb[0].mxu0
        %v423 = vadd.f32 0.0, %v422
        %v424 = vpop.f32.mrb[0].mxu0
        %v425 = vpop.f32.mrb[0].mxu0
        %v426 = vadd.f32 0.0, %v425
        %v427 = vpop.f32.mrb[0].mxu0
        %428 = vdwg.mxu0
        %429 = vst [vmem:[#allocation2] sm:$0xff] %v415
        %430 = vst [vmem:[#allocation2 + $0x8] sm:$0xff] %v418
        %431 = vst [vmem:[#allocation2 + $0x10] sm:$0xff] %v423
        %432 = vst [vmem:[#allocation2 + $0x18] sm:$0xff] %v426
        %433 = vst [vmem:[%s227] sm:$0xff] %v300
        %434 = vst [vmem:[%s227 + $0x8] sm:$0xff] %v303
        %435 = vst [vmem:[%s227 + $0x10] sm:$0xff] %v308
        %436 = vst [vmem:[%s227 + $0x18] sm:$0xff] %v311
        %v437 = vlaneseq
        %v438 = vand.u32 %v437, 127
        loop: start=0, step=1, limit=2
        $region45: #{tpu_custom_call.1} parent=35 // loop_pre_header
          _
        $region46: #{tpu_custom_call.1} parent=35 // loop_header
          %s440 = sphi 0, %s444
          %p441 = scmp.ge.s32.totalorder %s440, 2
        $region47: #{tpu_custom_call.1} parent=35 // loop_header_branch
          %443 = sbr.rel (%p441) target = $region51
        $region48: #{tpu_custom_call.1} parent=35 // loop_body
          %s445 = smul.u32 %s27, 2
          %s446 = sadd.s32 %s445, %s440
          %s447 = sld [smem:[#allocation4 + %s446]]
          %s448 = smul.u32 %s440, 16
          %s449 = scalar_lea.vmem %s227, %s448 [#allocation10]
          %v450 = vld [vmem:[%s449] sm:$0xff]
          %v451 = vld [vmem:[%s449 + $0x8] sm:$0xff]
          %s452 = scalar_lea.vmem [#allocation2], %s448
          %v453 = vld [vmem:[%s452] sm:$0xff]
          %v454 = vld [vmem:[%s452 + $0x8] sm:$0xff]
          %455 = vxpose.xlu0.b32.start [1/16] %v453, 128
          %456 = vxpose.xlu0.b32.cont [2/16] %v454, 128
          %457 = vxpose.xlu0.b32.cont [3/16] 0.0, 128
          %458 = vxpose.xlu0.b32.cont [4/16] 0.0, 128
          %459 = vxpose.xlu0.b32.cont [5/16] 0.0, 128
          %460 = vxpose.xlu0.b32.cont [6/16] 0.0, 128
          %461 = vxpose.xlu0.b32.cont [7/16] 0.0, 128
          %462 = vxpose.xlu0.b32.cont [8/16] 0.0, 128
          %463 = vxpose.xlu0.b32.cont [9/16] 0.0, 128
          %464 = vxpose.xlu0.b32.cont [10/16] 0.0, 128
          %465 = vxpose.xlu0.b32.cont [11/16] 0.0, 128
          %466 = vxpose.xlu0.b32.cont [12/16] 0.0, 128
          %467 = vxpose.xlu0.b32.cont [13/16] 0.0, 128
          %468 = vxpose.xlu0.b32.cont [14/16] 0.0, 128
          %469 = vxpose.xlu0.b32.cont [15/16] 0.0, 128
          %470 = vxpose.xlu0.b32.end [16/16] 0.0, 128
          %v471 = vpop.trf.xlu0
          %v472 = vpop.trf.xlu0
          %v473 = vpop.trf.xlu0
          %v474 = vpop.trf.xlu0
          %v475 = vpop.trf.xlu0
          %v476 = vpop.trf.xlu0
          %v477 = vpop.trf.xlu0
          %v478 = vpop.trf.xlu0
          %v479 = vpop.trf.xlu0
          %v480 = vpop.trf.xlu0
          %v481 = vpop.trf.xlu0
          %v482 = vpop.trf.xlu0
          %v483 = vpop.trf.xlu0
          %v484 = vpop.trf.xlu0
          %v485 = vpop.trf.xlu0
          %v486 = vpop.trf.xlu0
          %v487 = vstv %s447
          %vm488 = vcmp.lt.s32.totalorder %v438, %v487
          %s489 = sld [smem:[#allocation9]]
          %491 = vset.pattern.permute.xlu0 0
          %492 = vperm.xlu0 %491, %v453
          %v493 = vpop.permute.xlu0 %492
          %496 = vset.pattern.permute.xlu0 0
          %497 = vperm.xlu0 %496, %v454
          %v498 = vpop.permute.xlu0 %497
          %v500 = vlaneseq
          %v501 = vshrl.u32 %v500, 7
          %v502 = vsub.s32 1, %v501
          %v503 = vrot.slane %v471, %v502
          %v504 = vadd.f32 %v493, %v503
          %v505 = vadd.f32 %v498, %v503
          %v506 = vstv %s489
          %v507 = vadd.f32 %v504, %v506
          %v508 = vadd.f32 %v505, %v506
          %vm509 = vcmp.gt.f32.partialorder %v507, 0.0
          %vm510 = vcmp.gt.f32.partialorder %v508, 0.0
          %v511 = vmul.f32 %v507, 0.01
          %v512 = vmul.f32 %v508, 0.01
          %v513 = vsel %vm509, %v507, %v511
          %v514 = vsel %vm510, %v508, %v512
          %v515 = vsel %vm488, %v513, -1e+30
          %v516 = vsel %vm488, %v514, -1e+30
          %v517 = vsel %vm258, %v515, -inf
          %518 = vmax.xlane.f32.xlu0 %v517
          %v519 = vpop.xlane.xlu0 %518
          %v520 = vsel %vm258, %v516, -inf
          %521 = vmax.xlane.f32.xlu0 %v520
          %v522 = vpop.xlane.xlu0 %521
          %v523 = vsub.f32 %v515, %v519
          %v524 = vsub.f32 %v516, %v522
          %v525 = vmul.f32 %v523, 1.442695
          %v526 = vpow.pop %v525
          %v527 = vmul.f32 %v524, 1.442695
          %v528 = vpow.pop %v527
          %v529 = vsel %vm258, %v526, 0.0
          %530 = vadd.xlane.f32.xlu0 %v529
          %v531 = vpop.xlane.xlu0 %530
          %v532 = vsel %vm258, %v528, 0.0
          %533 = vadd.xlane.f32.xlu0 %v532
          %v534 = vpop.xlane.xlu0 %533
          %v535 = vrcp.pop %v531
          %v536 = vrcp.pop %v534
          %v537 = vmul.f32 %v526, %v535
          %v538 = vmul.f32 %v528, %v536
          %vm539 = vcmp.ge.s32.totalorder %v438, 0
          %vm540 = vcmp.lt.s32.totalorder %v438, 16
          %vm541 = vmand %vm539, %vm540
          %v542 = vsel %vm541, %v450, 0.0
          %v543 = vsel %vm541, %v451, 0.0
          %v544 = vpack.c.bf16 %v538, %v537
          %v545 = vpack.c.bf16 %v543, %v542
          %s546 = sld [smem:[#allocation9 + $0x1]]
          %547 = vset.pattern.permute.xlu0 2
          %548 = vperm.xlu0 %547, %v453
          %v549 = vpop.permute.xlu0 %548
          %551 = vset.pattern.permute.xlu0 2
          %552 = vperm.xlu0 %551, %v454
          %v553 = vpop.permute.xlu0 %552
          %v555 = vlaneseq
          %v556 = vshrl.u32 %v555, 7
          %v557 = vsub.s32 3, %v556
          %v558 = vrot.slane %v471, %v557
          %v559 = vadd.f32 %v549, %v558
          %v560 = vadd.f32 %v553, %v558
          %v561 = vstv %s546
          %v562 = vadd.f32 %v559, %v561
          %v563 = vadd.f32 %v560, %v561
          %vm564 = vcmp.gt.f32.partialorder %v562, 0.0
          %vm565 = vcmp.gt.f32.partialorder %v563, 0.0
          %v566 = vmul.f32 %v562, 0.01
          %v567 = vmul.f32 %v563, 0.01
          %v568 = vsel %vm564, %v562, %v566
          %v569 = vsel %vm565, %v563, %v567
          %v570 = vsel %vm488, %v568, -1e+30
          %v571 = vsel %vm488, %v569, -1e+30
          %v572 = vsel %vm258, %v570, -inf
          %573 = vmax.xlane.f32.xlu0 %v572
          %v574 = vpop.xlane.xlu0 %573
          %v575 = vsel %vm258, %v571, -inf
          %576 = vmax.xlane.f32.xlu0 %v575
          %v577 = vpop.xlane.xlu0 %576
          %v578 = vsub.f32 %v570, %v574
          %v579 = vsub.f32 %v571, %v577
          %v580 = vmul.f32 %v578, 1.442695
          %v581 = vpow.pop %v580
          %v582 = vmul.f32 %v579, 1.442695
          %v583 = vpow.pop %v582
          %v584 = vsel %vm258, %v581, 0.0
          %585 = vadd.xlane.f32.xlu0 %v584
          %v586 = vpop.xlane.xlu0 %585
          %v587 = vsel %vm258, %v583, 0.0
          %588 = vadd.xlane.f32.xlu0 %v587
          %v589 = vpop.xlane.xlu0 %588
          %v590 = vrcp.pop %v586
          %v591 = vrcp.pop %v589
          %v592 = vmul.f32 %v581, %v590
          %v593 = vmul.f32 %v583, %v591
          %vm594 = vcmp.ge.s32.totalorder %v438, 16
          %vm595 = vcmp.lt.s32.totalorder %v438, 32
          %vm596 = vmand %vm594, %vm595
          %v597 = vsel %vm596, %v450, 0.0
          %v598 = vsel %vm596, %v451, 0.0
          %v599 = vpack.c.bf16 %v593, %v592
          %v600 = vpack.c.bf16 %v598, %v597
          %v602 = vsel %vm258, %v599, 0
          %604 = vmatprep.subr.bf16.mxu0 0
          %605 = vmatpush1.bf16.msra.mxu0 %v600
          %606 = vmatprep.subr.bf16.mxu0 0
          %607 = vmatpush1.bf16.msra.mxu0 0
          %608 = vmatprep.subr.bf16.mxu0 0
          %609 = vmatpush1.bf16.msra.mxu0 0
          %610 = vmatprep.subr.bf16.mxu0 0
          %611 = vmatpush1.bf16.msra.mxu0 0
          %612 = vmatprep.subr.bf16.mxu0 0
          %613 = vmatpush1.bf16.msra.mxu0 0
          %614 = vmatprep.subr.bf16.mxu0 0
          %615 = vmatpush1.bf16.msra.mxu0 0
          %616 = vmatprep.subr.bf16.mxu0 0
          %617 = vmatpush1.bf16.msra.mxu0 0
          %618 = vmatprep.subr.bf16.mxu0 0
          %619 = vmatpush1.bf16.msra.mxu0 0
          %620 = vmatprep.subr.bf16.mxu0 0
          %621 = vmatpush1.bf16.msra.mxu0 0
          %622 = vmatprep.subr.bf16.mxu0 0
          %623 = vmatpush1.bf16.msra.mxu0 0
          %624 = vmatprep.subr.bf16.mxu0 0
          %625 = vmatpush1.bf16.msra.mxu0 0
          %626 = vmatprep.subr.bf16.mxu0 0
          %627 = vmatpush1.bf16.msra.mxu0 0
          %628 = vmatprep.subr.bf16.mxu0 0
          %629 = vmatpush1.bf16.msra.mxu0 0
          %630 = vmatprep.subr.bf16.mxu0 0
          %631 = vmatpush1.bf16.msra.mxu0 0
          %632 = vmatprep.subr.bf16.mxu0 0
          %633 = vmatpush1.bf16.msra.mxu0 0
          %634 = vmatprep.subr.bf16.mxu0 0
          %635 = vmatpush1.bf16.msra.mxu0 0
          %636 = vmatprep.mubr.bf16.mxu0 0
          %637 = vmatmul.mubr.bf16.gmra.mrb[0].mxu0 %v602
          %v638 = vpop.f32.mrb[0].mxu0
          %v639 = vadd.f32 0.0, %v638
          %v640 = vpop.f32.mrb[0].mxu0
          %v641 = vpop.f32.mrb[0].mxu0
          %v642 = vadd.f32 0.0, %v641
          %v643 = vpop.f32.mrb[0].mxu0
          %644 = vdwg.mxu0
          %v646 = vsel %vm258, %v544, 0
          %648 = vmatprep.subr.bf16.mxu0 0
          %649 = vmatpush1.bf16.msra.mxu0 %v545
          %650 = vmatprep.subr.bf16.mxu0 0
          %651 = vmatpush1.bf16.msra.mxu0 0
          %652 = vmatprep.subr.bf16.mxu0 0
          %653 = vmatpush1.bf16.msra.mxu0 0
          %654 = vmatprep.subr.bf16.mxu0 0
          %655 = vmatpush1.bf16.msra.mxu0 0
          %656 = vmatprep.subr.bf16.mxu0 0
          %657 = vmatpush1.bf16.msra.mxu0 0
          %658 = vmatprep.subr.bf16.mxu0 0
          %659 = vmatpush1.bf16.msra.mxu0 0
          %660 = vmatprep.subr.bf16.mxu0 0
          %661 = vmatpush1.bf16.msra.mxu0 0
          %662 = vmatprep.subr.bf16.mxu0 0
          %663 = vmatpush1.bf16.msra.mxu0 0
          %664 = vmatprep.subr.bf16.mxu0 0
          %665 = vmatpush1.bf16.msra.mxu0 0
          %666 = vmatprep.subr.bf16.mxu0 0
          %667 = vmatpush1.bf16.msra.mxu0 0
          %668 = vmatprep.subr.bf16.mxu0 0
          %669 = vmatpush1.bf16.msra.mxu0 0
          %670 = vmatprep.subr.bf16.mxu0 0
          %671 = vmatpush1.bf16.msra.mxu0 0
          %672 = vmatprep.subr.bf16.mxu0 0
          %673 = vmatpush1.bf16.msra.mxu0 0
          %674 = vmatprep.subr.bf16.mxu0 0
          %675 = vmatpush1.bf16.msra.mxu0 0
          %676 = vmatprep.subr.bf16.mxu0 0
          %677 = vmatpush1.bf16.msra.mxu0 0
          %678 = vmatprep.subr.bf16.mxu0 0
          %679 = vmatpush1.bf16.msra.mxu0 0
          %680 = vmatprep.mubr.bf16.mxu0 0
          %681 = vmatmul.mubr.bf16.gmra.mrb[0].mxu0 %v646
          %v682 = vpop.f32.mrb[0].mxu0
          %v683 = vadd.f32 %v639, %v682
          %v684 = vpop.f32.mrb[0].mxu0
          %v685 = vpop.f32.mrb[0].mxu0
          %v686 = vadd.f32 %v642, %v685
          %v687 = vpop.f32.mrb[0].mxu0
          %688 = vdwg.mxu0
          %v689 = vadd.f32 %v450, %v683
          %v690 = vadd.f32 %v451, %v686
          %691 = vst [vmem:[%s449] sm:$0xff] %v689
          %692 = vst [vmem:[%s449 + $0x8] sm:$0xff] %v690
        $region49: #{tpu_custom_call.1} parent=35 // loop_footer
          %s444 = sadd.s32 1, %s440
        $region50: #{tpu_custom_call.1} parent=35 // loop_footer_branch
          %439 = sbr.rel target = $region46
        $region51: #{tpu_custom_call.1} parent=35 // loop_exit
          _
        %s693 = sand.u32 %s124, 1
        %s694 = scalar_lea.sflag [#allocation7], %s693
        %s695 = sand.u32 %s124, 1
        %s696 = smul.addr %s695, 32
        %s697 = scalar_lea.vmem [#allocation10], %s696
        // Predicated region
        $region52: #{tpu_custom_call.1} parent=35 // pred_check
          %p698 = pneg %p134
        $region53: #{tpu_custom_call.1} parent=35 // pred_check_branch
          %700 = sbr.rel (%p698) target = $region55
        $region54: #{tpu_custom_call.1} parent=35 // pred_region
          %s701 = smul.u32 4, %s27
          %s703 = ssub.s32 512, 512
          %704 = vsyncadd %s694, %s703
          %s705 = smul.addr %s701, 128
          %s706 = scalar_lea.hbm %s5, %s705
          %s707 = sshll.u32 %s697, 4
          %s708 = int_to_ptr.vmem [resolvable:$true] %s707
          %713 = dma.vmem_to_hbm [thread:$0]  %s708, 512, %s706, %s694, 128, 128, 8
        $region55: #{tpu_custom_call.1} parent=35 // pred_fallthru
          _
      $region36: #{tpu_custom_call.1} parent=5 // pred_fallthru
        _
      %p714 = scmp.le.s32.totalorder 2, %s22
      // Predicated region
      $region56: #{tpu_custom_call.1} parent=5 // pred_check
        %p715 = pneg %p714
      $region57: #{tpu_custom_call.1} parent=5 // pred_check_branch
        %717 = sbr.rel (%p715) target = $region59
      $region58: #{tpu_custom_call.1} parent=5 // pred_region
        %s718 = ssub.s32 %s22, 2
        // Predicated region
        $region60: #{tpu_custom_call.1} parent=58 // pred_check
          %p719 = pneg %p140
        $region61: #{tpu_custom_call.1} parent=58 // pred_check_branch
          %721 = sbr.rel (%p719) target = $region63
        $region62: #{tpu_custom_call.1} parent=58 // pred_region
          %s722 = sand.u32 %s125, 1
          %s723 = scalar_lea.sflag [#allocation7], %s722
          %s724 = sand.u32 %s125, 1
          %s725 = smul.addr %s724, 32
          %s726 = scalar_lea.vmem [#allocation10], %s725
          %727 = dma.done %s723, 512
        $region63: #{tpu_custom_call.1} parent=58 // pred_fallthru
          _
      $region59: #{tpu_custom_call.1} parent=5 // pred_fallthru
        _
    $region6: #{tpu_custom_call.1} parent=1 // loop_footer
      %s26 = sadd.s32 1, %s22
    $region7: #{tpu_custom_call.1} parent=1 // loop_footer_branch
      %21 = sbr.rel target = $region3
    $region8: #{tpu_custom_call.1} parent=1 // loop_exit
      _
    %728 = vsyncpa [#allocation6], 1
    %s729 = scalar_lea.sflag [#allocation6], 1
    %730 = vsyncpa %s729, 1
    %731 = vsyncpa [#allocation7], 1
    %s732 = scalar_lea.sflag [#allocation7], 1
    %733 = vsyncpa %s732, 1
    %734 = vsyncpa [#allocation8], 1
    %s735 = scalar_lea.sflag [#allocation8], 1
    %736 = vsyncpa %s735, 1

</llo_original>
